<compile_context>
chip_gen: v5e
topology: v5e:2x2
jax: 0.10.0
libtpu: 0.0.40
codegen_flags: <defaults>
</compile_context>

<pallas_src>
import math

import jax
import jax.numpy as jnp
from jax.experimental import pallas as pl
from jax.experimental.pallas import tpu as pltpu


# ------------------------------ kernels ------------------------------------


def support_kernel(x_ref, w_ref, o_ref, acc_ref):
    """support = X @ W, tiled over (rows, F_in-reduction)."""
    k = pl.program_id(1)

    @pl.when(k == 0)
    def _():
        acc_ref[...] = jnp.zeros_like(acc_ref)

    acc_ref[...] += jnp.dot(
        x_ref[...], w_ref[...], preferred_element_type=jnp.float32
    )

    @pl.when(k == pl.num_programs(1) - 1)
    def _():
        o_ref[...] = acc_ref[...].astype(o_ref.dtype)


def aggregate_kernel(adj_ref, s_ref, b_ref, o_ref, acc_ref):
    """out = ReLU(adj @ support + bias), tiled over (rows, adj-reduction)."""
    k = pl.program_id(1)

    @pl.when(k == 0)
    def _():
        acc_ref[...] = jnp.zeros_like(acc_ref)

    acc_ref[...] += jnp.dot(
        adj_ref[...], s_ref[...], preferred_element_type=jnp.float32
    )

    # Bias + ReLU only once, on the f32 accumulator, in the final k step.
    @pl.when(k == pl.num_programs(1) - 1)
    def _():
        out = acc_ref[...] + b_ref[...]
        o_ref[...] = jnp.maximum(out, 0.0).astype(o_ref.dtype)


# ------------------------------ wrapper -------------------------------------


def _round_up(x, m):
    return ((x + m - 1) // m) * m


def graph_convolution(adj_norm, x, weight, bias, *, tm=256, tk_adj=256, tk_in=256):
    """GCN layer forward.

    adj_norm: (N, N) row-normalized adjacency; x: (N, F_in);
    weight: (F_in, F_out); bias: (F_out,). Returns (N, F_out) in x.dtype.
    """
    N, F_in = x.shape
    F_out = weight.shape[1]
    out_dtype = x.dtype

    # Pad to tile multiples; pad of F_out to a multiple of 128 keeps the
    # output lane dimension dense (full vregs / unmasked stores).
    n_pad = _round_up(N, max(tm, tk_adj))
    fin_pad = _round_up(F_in, tk_in)
    fout_pad = _round_up(F_out, 128)

    adj_p = jnp.pad(adj_norm, ((0, n_pad - N), (0, n_pad - N))).astype(jnp.bfloat16)
    x_p = jnp.pad(x, ((0, n_pad - N), (0, fin_pad - F_in))).astype(jnp.bfloat16)
    w_p = jnp.pad(weight, ((0, fin_pad - F_in), (0, fout_pad - F_out))).astype(
        jnp.bfloat16
    )
    # Padded bias columns are zero -> padded output columns stay zero.
    b_p = jnp.pad(bias, (0, fout_pad - F_out)).astype(jnp.float32).reshape(1, fout_pad)

    # ---- Pass 1: support = X @ W (computed exactly once, stored bf16) ------
    support = pl.pallas_call(
        support_kernel,
        out_shape=jax.ShapeDtypeStruct((n_pad, fout_pad), jnp.bfloat16),
        grid_spec=pltpu.PrefetchScalarGridSpec(
            num_scalar_prefetch=0,
            grid=(n_pad // tm, fin_pad // tk_in),
            in_specs=[
                pl.BlockSpec((tm, tk_in), lambda i, k: (i, k)),        # X tile
                pl.BlockSpec((tk_in, fout_pad), lambda i, k: (k, 0)),  # W slab
            ],
            out_specs=pl.BlockSpec((tm, fout_pad), lambda i, k: (i, 0)),
            scratch_shapes=[pltpu.VMEM((tm, fout_pad), jnp.float32)],
        ),
        compiler_params=pltpu.CompilerParams(
            dimension_semantics=("parallel", "arbitrary")
        ),
    )(x_p, w_p)

    # ---- Pass 2: out = ReLU(adj @ support + bias) ---------------------------
    out_p = pl.pallas_call(
        aggregate_kernel,
        out_shape=jax.ShapeDtypeStruct((n_pad, fout_pad), out_dtype),
        grid_spec=pltpu.PrefetchScalarGridSpec(
            num_scalar_prefetch=0,
            grid=(n_pad // tm, n_pad // tk_adj),
            in_specs=[
                pl.BlockSpec((tm, tk_adj), lambda i, k: (i, k)),        # adj tile
                pl.BlockSpec((tk_adj, fout_pad), lambda i, k: (k, 0)),  # support
                pl.BlockSpec((1, fout_pad), lambda i, k: (0, 0)),       # bias
            ],
            out_specs=pl.BlockSpec((tm, fout_pad), lambda i, k: (i, 0)),
            scratch_shapes=[pltpu.VMEM((tm, fout_pad), jnp.float32)],
        ),
        compiler_params=pltpu.CompilerParams(
            dimension_semantics=("parallel", "arbitrary")
        ),
    )(adj_p, support, b_p)

    # Slice padded rows/cols away.
    return out_p[:N, :F_out]


def row_normalize(adj):
    """Row-normalize adjacency (dense), matching the numpy `normalize` helper."""
    rowsum = adj.sum(axis=1)
    r_inv = jnp.where(rowsum > 0, 1.0 / rowsum, 0.0)
    return adj * r_inv[:, None]


if __name__ == "__main__":
    key = jax.random.PRNGKey(0)
    k_adj, k_x, k_w, k_b = jax.random.split(key, 4)

    N = 16            # number of graph nodes (toy size; kernel tiles at 256)
    in_features = 32
    out_features = 64

    # Deterministic random binary adjacency with self-loops, row-normalized.
    adj_raw = (jax.random.uniform(k_adj, (N, N)) < 0.3).astype(jnp.float32)
    adj_raw = jnp.maximum(adj_raw, jnp.eye(N, dtype=jnp.float32))
    adj_norm = row_normalize(adj_raw)

    # Node features.
    x = jax.random.normal(k_x, (N, in_features), dtype=jnp.float32)

    # Parameter init matching reset_parameters(): uniform(-stdv, stdv),
    # stdv = 1/sqrt(F_out).
    stdv = 1.0 / math.sqrt(out_features)
    weight = jax.random.uniform(k_w, (in_features, out_features),
                                minval=-stdv, maxval=stdv, dtype=jnp.float32)
    bias = jax.random.uniform(k_b, (out_features,),
                              minval=-stdv, maxval=stdv, dtype=jnp.float32)

    out = graph_convolution(adj_norm, x, weight, bias)
    out = jax.block_until_ready(out)

    # Reference in plain JAX (f32). Kernel uses bf16 MXU inputs with f32
    # accumulation, so compare with a bf16-appropriate tolerance.
    ref = jnp.maximum(adj_norm @ (x @ weight) + bias, 0.0)
    assert out.shape == (N, out_features)
    assert jnp.allclose(out, ref, atol=3e-2, rtol=3e-2), "mismatch vs reference"

    print("KERNEL_OK")
</pallas_src>

<mosaic_0001>
module attributes {stable_mosaic.version = 11 : i64} {
  func.func @support_kernel(%arg0: i32, %arg1: i32, %arg2: memref<256x256xbf16, #tpu.memory_space<vmem>>, %arg3: memref<256x128xbf16, #tpu.memory_space<vmem>>, %arg4: memref<256x128xbf16, #tpu.memory_space<vmem>>, %arg5: memref<256x128xf32, #tpu.memory_space<vmem>>) attributes {dimension_semantics = [#tpu.dimension_semantics<parallel>, #tpu.dimension_semantics<arbitrary>], iteration_bounds = array<i64: 1, 1>, scalar_prefetch = 0 : i64, scratch_operands = 1 : i64, tpu.core_type = #tpu.core_type<tc>, window_params = [{transform_indices = @transform_0, window_bounds = array<i64: 256, 256>}, {transform_indices = @transform_1, window_bounds = array<i64: 256, 128>}, {transform_indices = @transform_2, window_bounds = array<i64: 256, 128>}]} {
    %c0_i32 = arith.constant 0 : i32
    %0 = arith.cmpi eq, %arg1, %c0_i32 : i32
    %1 = arith.extui %0 : i1 to i32
    %c0_i32_0 = arith.constant 0 : i32
    %2 = arith.cmpi ne, %1, %c0_i32_0 : i32
    scf.if %2 {
      %cst_10 = arith.constant 0.000000e+00 : f32
      %12 = vector.broadcast %cst_10 : f32 to vector<256x128xf32>
      %c0_11 = arith.constant 0 : index
      %c0_12 = arith.constant 0 : index
      %13 = vector.load %arg5[%c0_11, %c0_12] : memref<256x128xf32, #tpu.memory_space<vmem>>, vector<256x128xf32>
      tpu.vector_store %arg5[%c0_11, %c0_12], %12 {strides = array<i32>} : memref<256x128xf32, #tpu.memory_space<vmem>>, vector<256x128xf32>,
    } else {
    }
    %c0 = arith.constant 0 : index
    %c0_1 = arith.constant 0 : index
    %3 = vector.load %arg5[%c0, %c0_1] : memref<256x128xf32, #tpu.memory_space<vmem>>, vector<256x128xf32>
    %c0_2 = arith.constant 0 : index
    %c0_3 = arith.constant 0 : index
    %4 = vector.load %arg2[%c0_2, %c0_3] : memref<256x256xbf16, #tpu.memory_space<vmem>>, vector<256x256xbf16>
    %c0_4 = arith.constant 0 : index
    %c0_5 = arith.constant 0 : index
    %5 = vector.load %arg3[%c0_4, %c0_5] : memref<256x128xbf16, #tpu.memory_space<vmem>>, vector<256x128xbf16>
    %cst = arith.constant dense<0.000000e+00> : vector<256x128xf32>
    %6 = tpu.matmul %4, %5, %cst {dimension_numbers = #tpu.dot_dimension_numbers<[1], [0], [0], [1], [0, 0, 1, 1], [], []>} : vector<256x256xbf16>, vector<256x128xbf16>, vector<256x128xf32> -> vector<256x128xf32>
    %7 = arith.addf %3, %6 : vector<256x128xf32>
    %c0_6 = arith.constant 0 : index
    %c0_7 = arith.constant 0 : index
    %8 = vector.load %arg5[%c0_6, %c0_7] : memref<256x128xf32, #tpu.memory_space<vmem>>, vector<256x128xf32>
    tpu.vector_store %arg5[%c0_6, %c0_7], %7 {strides = array<i32>} : memref<256x128xf32, #tpu.memory_space<vmem>>, vector<256x128xf32>,
    %c0_i32_8 = arith.constant 0 : i32
    %9 = arith.cmpi eq, %arg1, %c0_i32_8 : i32
    %10 = arith.extui %9 : i1 to i32
    %c0_i32_9 = arith.constant 0 : i32
    %11 = arith.cmpi ne, %10, %c0_i32_9 : i32
    scf.if %11 {
      %c0_10 = arith.constant 0 : index
      %c0_11 = arith.constant 0 : index
      %12 = vector.load %arg5[%c0_10, %c0_11] : memref<256x128xf32, #tpu.memory_space<vmem>>, vector<256x128xf32>
      %13 = arith.truncf %12 : vector<256x128xf32> to vector<256x128xbf16>
      %c0_12 = arith.constant 0 : index
      %c0_13 = arith.constant 0 : index
      %14 = vector.load %arg4[%c0_12, %c0_13] : memref<256x128xbf16, #tpu.memory_space<vmem>>, vector<256x128xbf16>
      tpu.vector_store %arg4[%c0_12, %c0_13], %13 {strides = array<i32>} : memref<256x128xbf16, #tpu.memory_space<vmem>>, vector<256x128xbf16>,
    } else {
    }
    return
  }
  func.func @transform_0(%arg0: i32, %arg1: i32) -> (i32, i32) {
    %c0_i32 = arith.constant 0 : i32
    return %arg0, %arg1 : i32, i32
  }
  func.func @transform_1(%arg0: i32, %arg1: i32) -> (i32, i32) {
    %c0_i32 = arith.constant 0 : i32
    %c0_i32_0 = arith.constant 0 : i32
    return %arg1, %c0_i32 : i32, i32
  }
  func.func @transform_2(%arg0: i32, %arg1: i32) -> (i32, i32) {
    %c0_i32 = arith.constant 0 : i32
    %c0_i32_0 = arith.constant 0 : i32
    return %arg0, %c0_i32 : i32, i32
  }
}

</mosaic_0001>

<llo_original>
// kernel: tpu_custom_call.1
$region0: #{tpu_custom_call.1}
  #allocation0 [shape = 'u32[]', space=smem, size = 0x4, offset = 0x4, fixed_abs, tag = 'smem constant byte address 0x4 - core index']
  #allocation1 [shape = 'u32[72,128]{1,0:T(1,128)}', space=vmem, size = 0x9000, scoped, tag = 'internal scratch']
  #allocation2 [shape = 'f32[256,128]{1,0:T(8,128)}', space=vmem, size = 0x20000, scoped, tag = 'scratch operand']
  %s0 = inlined_call_operand.hbm [shape: bf16[256,256], index: 0, kind: input, shape index: {}]
  %s1 = inlined_call_operand.hbm [shape: bf16[256,128], index: 1, kind: input, shape index: {}]
  %s2 = inlined_call_operand.hbm [shape: bf16[256,128], index: 2, kind: output, shape index: {}]
  %s3 = sld [smem:[#allocation0]]
  $region34: #{tpu_custom_call.1} parent=0
    _
  %s5 = ssub.s32 1, %s3
  %s6 = scalar_select 0, %s5, %s3
  $region1: #{tpu_custom_call.1} parent=0
    #allocation3 [shape = 'u8[131072]{0}', space=vmem, size = 0x20000, scoped, tag = 'input window, operand 0, single buffered']
    #allocation4 [shape = 's32[1]{0}', space=sflag, size = 0x4, scoped, tag = 'scoped memory for tpu_custom_call.1']
    #allocation5 [shape = 's32[1]{0}', space=sflag, size = 0x4, scoped, tag = 'scoped memory for tpu_custom_call.1']
    #allocation6 [shape = 'u8[65536]{0}', space=vmem, size = 0x10000, scoped, tag = 'input window, operand 1, single buffered']
    #allocation7 [shape = 's32[1]{0}', space=sflag, size = 0x4, scoped, tag = 'scoped memory for tpu_custom_call.1']
    #allocation8 [shape = 'u8[65536]{0}', space=vmem, size = 0x10000, scoped, tag = 'output window, operand 0, single buffered']
    %7 = vsyncpa [#allocation4], 0
    %8 = vsyncpa [#allocation7], 0
    %9 = vsyncpa [#allocation5], 0
    // Predicated region
    $region2: #{tpu_custom_call.1} parent=1 // pred_check
      _
    $region3: #{tpu_custom_call.1} parent=1 // pred_check_branch
      %11 = sbr.rel (0) target = $region5
    $region4: #{tpu_custom_call.1} parent=1 // pred_region
      %13 = vsyncadd [#allocation4], 0
      %s14 = sshll.u32 %s0, 4
      %s15 = int_to_ptr.hbm [resolvable:$true] %s14
      %s16 = sshll.u32 [#allocation3], 4
      %s17 = int_to_ptr.vmem [resolvable:$true] %s16
      %22 = dma.hbm_to_vmem [thread:$0]  %s15, 4096, %s17, [#allocation4], 128, 128, 8
    $region5: #{tpu_custom_call.1} parent=1 // pred_fallthru
      _
    // Predicated region
    $region6: #{tpu_custom_call.1} parent=1 // pred_check
      _
    $region7: #{tpu_custom_call.1} parent=1 // pred_check_branch
      %24 = sbr.rel (0) target = $region9
    $region8: #{tpu_custom_call.1} parent=1 // pred_region
      %26 = vsyncadd [#allocation7], 0
      %s27 = sshll.u32 %s1, 4
      %s28 = int_to_ptr.hbm [resolvable:$true] %s27
      %s29 = sshll.u32 [#allocation6], 4
      %s30 = int_to_ptr.vmem [resolvable:$true] %s29
      %35 = dma.hbm_to_vmem [thread:$0]  %s28, 2048, %s30, [#allocation7], 64, 64, 4
    $region9: #{tpu_custom_call.1} parent=1 // pred_fallthru
      _
    // Predicated region
    $region10: #{tpu_custom_call.1} parent=1 // pred_check
      _
    $region11: #{tpu_custom_call.1} parent=1 // pred_check_branch
      %37 = sbr.rel (0) target = $region13
    $region12: #{tpu_custom_call.1} parent=1 // pred_region
      %39 = dma.done [#allocation4], 4096
    $region13: #{tpu_custom_call.1} parent=1 // pred_fallthru
      _
    // Predicated region
    $region14: #{tpu_custom_call.1} parent=1 // pred_check
      _
    $region15: #{tpu_custom_call.1} parent=1 // pred_check_branch
      %41 = sbr.rel (0) target = $region17
    $region16: #{tpu_custom_call.1} parent=1 // pred_region
      %43 = dma.done [#allocation7], 2048
    $region17: #{tpu_custom_call.1} parent=1 // pred_fallthru
      _
    %p44 = scmp.eq.s32.totalorder 0, 0
    // Predicated region
    $region18: #{tpu_custom_call.1} parent=1 // pred_check
      %p45 = pneg %p44
    $region19: #{tpu_custom_call.1} parent=1 // pred_check_branch
      %47 = sbr.rel (%p45) target = $region21
    $region20: #{tpu_custom_call.1} parent=1 // pred_region
      %48 = vst [vmem:[#allocation2] sm:$0xff] 0.0
      %49 = vst [vmem:[#allocation2 + $0x8] sm:$0xff] 0.0
      %50 = vst [vmem:[#allocation2 + $0x10] sm:$0xff] 0.0
      %51 = vst [vmem:[#allocation2 + $0x18] sm:$0xff] 0.0
      %52 = vst [vmem:[#allocation2 + $0x20] sm:$0xff] 0.0
      %53 = vst [vmem:[#allocation2 + $0x28] sm:$0xff] 0.0
      %54 = vst [vmem:[#allocation2 + $0x30] sm:$0xff] 0.0
      %55 = vst [vmem:[#allocation2 + $0x38] sm:$0xff] 0.0
      %56 = vst [vmem:[#allocation2 + $0x40] sm:$0xff] 0.0
      %57 = vst [vmem:[#allocation2 + $0x48] sm:$0xff] 0.0
      %58 = vst [vmem:[#allocation2 + $0x50] sm:$0xff] 0.0
      %59 = vst [vmem:[#allocation2 + $0x58] sm:$0xff] 0.0
      %60 = vst [vmem:[#allocation2 + $0x60] sm:$0xff] 0.0
      %61 = vst [vmem:[#allocation2 + $0x68] sm:$0xff] 0.0
      %62 = vst [vmem:[#allocation2 + $0x70] sm:$0xff] 0.0
      %63 = vst [vmem:[#allocation2 + $0x78] sm:$0xff] 0.0
      %64 = vst [vmem:[#allocation2 + $0x80] sm:$0xff] 0.0
      %65 = vst [vmem:[#allocation2 + $0x88] sm:$0xff] 0.0
      %66 = vst [vmem:[#allocation2 + $0x90] sm:$0xff] 0.0
      %67 = vst [vmem:[#allocation2 + $0x98] sm:$0xff] 0.0
      %68 = vst [vmem:[#allocation2 + $0xa0] sm:$0xff] 0.0
      %69 = vst [vmem:[#allocation2 + $0xa8] sm:$0xff] 0.0
      %70 = vst [vmem:[#allocation2 + $0xb0] sm:$0xff] 0.0
      %71 = vst [vmem:[#allocation2 + $0xb8] sm:$0xff] 0.0
      %72 = vst [vmem:[#allocation2 + $0xc0] sm:$0xff] 0.0
      %73 = vst [vmem:[#allocation2 + $0xc8] sm:$0xff] 0.0
      %74 = vst [vmem:[#allocation2 + $0xd0] sm:$0xff] 0.0
      %75 = vst [vmem:[#allocation2 + $0xd8] sm:$0xff] 0.0
      %76 = vst [vmem:[#allocation2 + $0xe0] sm:$0xff] 0.0
      %77 = vst [vmem:[#allocation2 + $0xe8] sm:$0xff] 0.0
      %78 = vst [vmem:[#allocation2 + $0xf0] sm:$0xff] 0.0
      %79 = vst [vmem:[#allocation2 + $0xf8] sm:$0xff] 0.0
    $region21: #{tpu_custom_call.1} parent=1 // pred_fallthru
      _
    %v80 = vld [vmem:[#allocation2] sm:$0xff]
    %v81 = vld [vmem:[#allocation2 + $0x8] sm:$0xff]
    %v82 = vld [vmem:[#allocation2 + $0x10] sm:$0xff]
    %v83 = vld [vmem:[#allocation2 + $0x18] sm:$0xff]
    %v84 = vld [vmem:[#allocation2 + $0x20] sm:$0xff]
    %v85 = vld [vmem:[#allocation2 + $0x28] sm:$0xff]
    %v86 = vld [vmem:[#allocation2 + $0x30] sm:$0xff]
    %v87 = vld [vmem:[#allocation2 + $0x38] sm:$0xff]
    %v88 = vld [vmem:[#allocation2 + $0x40] sm:$0xff]
    %v89 = vld [vmem:[#allocation2 + $0x48] sm:$0xff]
    %v90 = vld [vmem:[#allocation2 + $0x50] sm:$0xff]
    %v91 = vld [vmem:[#allocation2 + $0x58] sm:$0xff]
    %v92 = vld [vmem:[#allocation2 + $0x60] sm:$0xff]
    %v93 = vld [vmem:[#allocation2 + $0x68] sm:$0xff]
    %v94 = vld [vmem:[#allocation2 + $0x70] sm:$0xff]
    %v95 = vld [vmem:[#allocation2 + $0x78] sm:$0xff]
    %v96 = vld [vmem:[#allocation2 + $0x80] sm:$0xff]
    %v97 = vld [vmem:[#allocation2 + $0x88] sm:$0xff]
    %v98 = vld [vmem:[#allocation2 + $0x90] sm:$0xff]
    %v99 = vld [vmem:[#allocation2 + $0x98] sm:$0xff]
    %v100 = vld [vmem:[#allocation2 + $0xa0] sm:$0xff]
    %v101 = vld [vmem:[#allocation2 + $0xa8] sm:$0xff]
    %v102 = vld [vmem:[#allocation2 + $0xb0] sm:$0xff]
    %v103 = vld [vmem:[#allocation2 + $0xb8] sm:$0xff]
    %v104 = vld [vmem:[#allocation2 + $0xc0] sm:$0xff]
    %v105 = vld [vmem:[#allocation2 + $0xc8] sm:$0xff]
    %v106 = vld [vmem:[#allocation2 + $0xd0] sm:$0xff]
    %v107 = vld [vmem:[#allocation2 + $0xd8] sm:$0xff]
    %v108 = vld [vmem:[#allocation2 + $0xe0] sm:$0xff]
    %v109 = vld [vmem:[#allocation2 + $0xe8] sm:$0xff]
    %v110 = vld [vmem:[#allocation2 + $0xf0] sm:$0xff]
    %v111 = vld [vmem:[#allocation2 + $0xf8] sm:$0xff]
    %v112 = vld [vmem:[#allocation3] sm:$0xff]
    %v113 = vld [vmem:[#allocation3 + $0x8] sm:$0xff]
    %v114 = vld [vmem:[#allocation3 + $0x10] sm:$0xff]
    %v115 = vld [vmem:[#allocation3 + $0x18] sm:$0xff]
    %v116 = vld [vmem:[#allocation3 + $0x20] sm:$0xff]
    %v117 = vld [vmem:[#allocation3 + $0x28] sm:$0xff]
    %v118 = vld [vmem:[#allocation3 + $0x30] sm:$0xff]
    %v119 = vld [vmem:[#allocation3 + $0x38] sm:$0xff]
    %v120 = vld [vmem:[#allocation3 + $0x40] sm:$0xff]
    %v121 = vld [vmem:[#allocation3 + $0x48] sm:$0xff]
    %v122 = vld [vmem:[#allocation3 + $0x50] sm:$0xff]
    %v123 = vld [vmem:[#allocation3 + $0x58] sm:$0xff]
    %v124 = vld [vmem:[#allocation3 + $0x60] sm:$0xff]
    %v125 = vld [vmem:[#allocation3 + $0x68] sm:$0xff]
    %v126 = vld [vmem:[#allocation3 + $0x70] sm:$0xff]
    %v127 = vld [vmem:[#allocation3 + $0x78] sm:$0xff]
    %v128 = vld [vmem:[#allocation3 + $0x80] sm:$0xff]
    %v129 = vld [vmem:[#allocation3 + $0x88] sm:$0xff]
    %v130 = vld [vmem:[#allocation3 + $0x90] sm:$0xff]
    %v131 = vld [vmem:[#allocation3 + $0x98] sm:$0xff]
    %v132 = vld [vmem:[#allocation3 + $0xa0] sm:$0xff]
    %v133 = vld [vmem:[#allocation3 + $0xa8] sm:$0xff]
    %v134 = vld [vmem:[#allocation3 + $0xb0] sm:$0xff]
    %v135 = vld [vmem:[#allocation3 + $0xb8] sm:$0xff]
    %v136 = vld [vmem:[#allocation3 + $0xc0] sm:$0xff]
    %v137 = vld [vmem:[#allocation3 + $0xc8] sm:$0xff]
    %v138 = vld [vmem:[#allocation3 + $0xd0] sm:$0xff]
    %v139 = vld [vmem:[#allocation3 + $0xd8] sm:$0xff]
    %v140 = vld [vmem:[#allocation3 + $0xe0] sm:$0xff]
    %v141 = vld [vmem:[#allocation3 + $0xe8] sm:$0xff]
    %v142 = vld [vmem:[#allocation3 + $0xf0] sm:$0xff]
    %v143 = vld [vmem:[#allocation3 + $0xf8] sm:$0xff]
    %v144 = vld [vmem:[#allocation6] sm:$0xf]
    %v145 = vld [vmem:[#allocation6 + $0x4] sm:$0xf]
    %v146 = vld [vmem:[#allocation6 + $0x8] sm:$0xf]
    %v147 = vld [vmem:[#allocation6 + $0xc] sm:$0xf]
    %v148 = vld [vmem:[#allocation6 + $0x10] sm:$0xf]
    %v149 = vld [vmem:[#allocation6 + $0x14] sm:$0xf]
    %v150 = vld [vmem:[#allocation6 + $0x18] sm:$0xf]
    %v151 = vld [vmem:[#allocation6 + $0x1c] sm:$0xf]
    %v152 = vld [vmem:[#allocation6 + $0x20] sm:$0xf]
    %v153 = vld [vmem:[#allocation6 + $0x24] sm:$0xf]
    %v154 = vld [vmem:[#allocation6 + $0x28] sm:$0xf]
    %v155 = vld [vmem:[#allocation6 + $0x2c] sm:$0xf]
    %v156 = vld [vmem:[#allocation6 + $0x30] sm:$0xf]
    %v157 = vld [vmem:[#allocation6 + $0x34] sm:$0xf]
    %v158 = vld [vmem:[#allocation6 + $0x38] sm:$0xf]
    %v159 = vld [vmem:[#allocation6 + $0x3c] sm:$0xf]
    %v160 = vld [vmem:[#allocation6 + $0x40] sm:$0xf]
    %v161 = vld [vmem:[#allocation6 + $0x44] sm:$0xf]
    %v162 = vld [vmem:[#allocation6 + $0x48] sm:$0xf]
    %v163 = vld [vmem:[#allocation6 + $0x4c] sm:$0xf]
    %v164 = vld [vmem:[#allocation6 + $0x50] sm:$0xf]
    %v165 = vld [vmem:[#allocation6 + $0x54] sm:$0xf]
    %v166 = vld [vmem:[#allocation6 + $0x58] sm:$0xf]
    %v167 = vld [vmem:[#allocation6 + $0x5c] sm:$0xf]
    %v168 = vld [vmem:[#allocation6 + $0x60] sm:$0xf]
    %v169 = vld [vmem:[#allocation6 + $0x64] sm:$0xf]
    %v170 = vld [vmem:[#allocation6 + $0x68] sm:$0xf]
    %v171 = vld [vmem:[#allocation6 + $0x6c] sm:$0xf]
    %v172 = vld [vmem:[#allocation6 + $0x70] sm:$0xf]
    %v173 = vld [vmem:[#allocation6 + $0x74] sm:$0xf]
    %v174 = vld [vmem:[#allocation6 + $0x78] sm:$0xf]
    %v175 = vld [vmem:[#allocation6 + $0x7c] sm:$0xf]
    %v208 = vunpack.c.l.b16 %v112
    %v209 = vunpack.c.h.b16 %v112
    %v210 = vunpack.c.l.b16 %v113
    %v211 = vunpack.c.h.b16 %v113
    %v212 = vunpack.c.l.b16 %v114
    %v213 = vunpack.c.h.b16 %v114
    %v214 = vunpack.c.l.b16 %v115
    %v215 = vunpack.c.h.b16 %v115
    %v216 = vunpack.c.l.b16 %v116
    %v217 = vunpack.c.h.b16 %v116
    %v218 = vunpack.c.l.b16 %v117
    %v219 = vunpack.c.h.b16 %v117
    %v220 = vunpack.c.l.b16 %v118
    %v221 = vunpack.c.h.b16 %v118
    %v222 = vunpack.c.l.b16 %v119
    %v223 = vunpack.c.h.b16 %v119
    %v224 = vunpack.c.l.b16 %v120
    %v225 = vunpack.c.h.b16 %v120
    %v226 = vunpack.c.l.b16 %v121
    %v227 = vunpack.c.h.b16 %v121
    %v228 = vunpack.c.l.b16 %v122
    %v229 = vunpack.c.h.b16 %v122
    %v230 = vunpack.c.l.b16 %v123
    %v231 = vunpack.c.h.b16 %v123
    %v232 = vunpack.c.l.b16 %v124
    %v233 = vunpack.c.h.b16 %v124
    %v234 = vunpack.c.l.b16 %v125
    %v235 = vunpack.c.h.b16 %v125
    %v236 = vunpack.c.l.b16 %v126
    %v237 = vunpack.c.h.b16 %v126
    %v238 = vunpack.c.l.b16 %v127
    %v239 = vunpack.c.h.b16 %v127
    %v240 = vunpack.c.l.b16 %v128
    %v241 = vunpack.c.h.b16 %v128
    %v242 = vunpack.c.l.b16 %v129
    %v243 = vunpack.c.h.b16 %v129
    %v244 = vunpack.c.l.b16 %v130
    %v245 = vunpack.c.h.b16 %v130
    %v246 = vunpack.c.l.b16 %v131
    %v247 = vunpack.c.h.b16 %v131
    %v248 = vunpack.c.l.b16 %v132
    %v249 = vunpack.c.h.b16 %v132
    %v250 = vunpack.c.l.b16 %v133
    %v251 = vunpack.c.h.b16 %v133
    %v252 = vunpack.c.l.b16 %v134
    %v253 = vunpack.c.h.b16 %v134
    %v254 = vunpack.c.l.b16 %v135
    %v255 = vunpack.c.h.b16 %v135
    %v256 = vunpack.c.l.b16 %v136
    %v257 = vunpack.c.h.b16 %v136
    %v258 = vunpack.c.l.b16 %v137
    %v259 = vunpack.c.h.b16 %v137
    %v260 = vunpack.c.l.b16 %v138
    %v261 = vunpack.c.h.b16 %v138
    %v262 = vunpack.c.l.b16 %v139
    %v263 = vunpack.c.h.b16 %v139
    %v264 = vunpack.c.l.b16 %v140
    %v265 = vunpack.c.h.b16 %v140
    %v266 = vunpack.c.l.b16 %v141
    %v267 = vunpack.c.h.b16 %v141
    %v268 = vunpack.c.l.b16 %v142
    %v269 = vunpack.c.h.b16 %v142
    %v270 = vunpack.c.l.b16 %v143
    %v271 = vunpack.c.h.b16 %v143
    %v272 = vpack.c.b16 %v210, %v208
    %v273 = vpack.c.b16 %v211, %v209
    %v274 = vpack.c.b16 %v214, %v212
    %v275 = vpack.c.b16 %v215, %v213
    %v276 = vpack.c.b16 %v218, %v216
    %v277 = vpack.c.b16 %v219, %v217
    %v278 = vpack.c.b16 %v222, %v220
    %v279 = vpack.c.b16 %v223, %v221
    %v280 = vpack.c.b16 %v226, %v224
    %v281 = vpack.c.b16 %v227, %v225
    %v282 = vpack.c.b16 %v230, %v228
    %v283 = vpack.c.b16 %v231, %v229
    %v284 = vpack.c.b16 %v234, %v232
    %v285 = vpack.c.b16 %v235, %v233
    %v286 = vpack.c.b16 %v238, %v236
    %v287 = vpack.c.b16 %v239, %v237
    %v288 = vpack.c.b16 %v242, %v240
    %v289 = vpack.c.b16 %v243, %v241
    %v290 = vpack.c.b16 %v246, %v244
    %v291 = vpack.c.b16 %v247, %v245
    %v292 = vpack.c.b16 %v250, %v248
    %v293 = vpack.c.b16 %v251, %v249
    %v294 = vpack.c.b16 %v254, %v252
    %v295 = vpack.c.b16 %v255, %v253
    %v296 = vpack.c.b16 %v258, %v256
    %v297 = vpack.c.b16 %v259, %v257
    %v298 = vpack.c.b16 %v262, %v260
    %v299 = vpack.c.b16 %v263, %v261
    %v300 = vpack.c.b16 %v266, %v264
    %v301 = vpack.c.b16 %v267, %v265
    %v302 = vpack.c.b16 %v270, %v268
    %v303 = vpack.c.b16 %v271, %v269
    %v368 = vunpack.c.l.b16 %v144
    %v369 = vunpack.c.l.b16 %v145
    %v370 = vunpack.c.l.b16 %v146
    %v371 = vunpack.c.l.b16 %v147
    %v372 = vunpack.c.l.b16 %v148
    %v373 = vunpack.c.l.b16 %v149
    %v374 = vunpack.c.l.b16 %v150
    %v375 = vunpack.c.l.b16 %v151
    %v376 = vunpack.c.l.b16 %v152
    %v377 = vunpack.c.l.b16 %v153
    %v378 = vunpack.c.l.b16 %v154
    %v379 = vunpack.c.l.b16 %v155
    %v380 = vunpack.c.l.b16 %v156
    %v381 = vunpack.c.l.b16 %v157
    %v382 = vunpack.c.l.b16 %v158
    %v383 = vunpack.c.l.b16 %v159
    %v384 = vunpack.c.l.b16 %v160
    %v385 = vunpack.c.l.b16 %v161
    %v386 = vunpack.c.l.b16 %v162
    %v387 = vunpack.c.l.b16 %v163
    %v388 = vunpack.c.l.b16 %v164
    %v389 = vunpack.c.l.b16 %v165
    %v390 = vunpack.c.l.b16 %v166
    %v391 = vunpack.c.l.b16 %v167
    %v392 = vunpack.c.l.b16 %v168
    %v393 = vunpack.c.l.b16 %v169
    %v394 = vunpack.c.l.b16 %v170
    %v395 = vunpack.c.l.b16 %v171
    %v396 = vunpack.c.l.b16 %v172
    %v397 = vunpack.c.l.b16 %v173
    %v398 = vunpack.c.l.b16 %v174
    %v399 = vunpack.c.l.b16 %v175
    %v400 = vpack.c.b16 %v369, %v368
    %v401 = vpack.c.b16 %v371, %v370
    %v402 = vpack.c.b16 %v373, %v372
    %v403 = vpack.c.b16 %v375, %v374
    %v404 = vpack.c.b16 %v377, %v376
    %v405 = vpack.c.b16 %v379, %v378
    %v406 = vpack.c.b16 %v381, %v380
    %v407 = vpack.c.b16 %v383, %v382
    %v408 = vpack.c.b16 %v385, %v384
    %v409 = vpack.c.b16 %v387, %v386
    %v410 = vpack.c.b16 %v389, %v388
    %v411 = vpack.c.b16 %v391, %v390
    %v412 = vpack.c.b16 %v393, %v392
    %v413 = vpack.c.b16 %v395, %v394
    %v414 = vpack.c.b16 %v397, %v396
    %v415 = vpack.c.b16 %v399, %v398
    %432 = vmatpush.bf16.msra.mxu0 %v407
    %433 = vmatpush.bf16.msra.mxu0 %v406
    %434 = vmatpush.bf16.msra.mxu0 %v405
    %435 = vmatpush.bf16.msra.mxu0 %v404
    %436 = vmatpush.bf16.msra.mxu0 %v403
    %437 = vmatpush.bf16.msra.mxu0 %v402
    %438 = vmatpush.bf16.msra.mxu0 %v401
    %439 = vmatpush.bf16.msra.mxu0 %v400
    %440 = vmatmul.bf16.gmra.mxu0 %v272
    %v441 = vpop.f32.mrf.mxu0
    %v442 = vadd.f32 0.0, %v441
    %v443 = vpop.f32.mrf.mxu0
    %v444 = vadd.f32 0.0, %v443
    %445 = vmatmul.bf16.gmra.mxu0 %v274
    %v446 = vpop.f32.mrf.mxu0
    %v447 = vadd.f32 0.0, %v446
    %v448 = vpop.f32.mrf.mxu0
    %v449 = vadd.f32 0.0, %v448
    %450 = vmatmul.bf16.gmra.mxu0 %v276
    %v451 = vpop.f32.mrf.mxu0
    %v452 = vadd.f32 0.0, %v451
    %v453 = vpop.f32.mrf.mxu0
    %v454 = vadd.f32 0.0, %v453
    %455 = vmatmul.bf16.gmra.mxu0 %v278
    %v456 = vpop.f32.mrf.mxu0
    %v457 = vadd.f32 0.0, %v456
    %v458 = vpop.f32.mrf.mxu0
    %v459 = vadd.f32 0.0, %v458
    %460 = vmatmul.bf16.gmra.mxu0 %v280
    %v461 = vpop.f32.mrf.mxu0
    %v462 = vadd.f32 0.0, %v461
    %v463 = vpop.f32.mrf.mxu0
    %v464 = vadd.f32 0.0, %v463
    %465 = vmatmul.bf16.gmra.mxu0 %v282
    %v466 = vpop.f32.mrf.mxu0
    %v467 = vadd.f32 0.0, %v466
    %v468 = vpop.f32.mrf.mxu0
    %v469 = vadd.f32 0.0, %v468
    %470 = vmatmul.bf16.gmra.mxu0 %v284
    %v471 = vpop.f32.mrf.mxu0
    %v472 = vadd.f32 0.0, %v471
    %v473 = vpop.f32.mrf.mxu0
    %v474 = vadd.f32 0.0, %v473
    %475 = vmatmul.bf16.gmra.mxu0 %v286
    %v476 = vpop.f32.mrf.mxu0
    %v477 = vadd.f32 0.0, %v476
    %v478 = vpop.f32.mrf.mxu0
    %v479 = vadd.f32 0.0, %v478
    %480 = vmatmul.bf16.gmra.mxu0 %v288
    %v481 = vpop.f32.mrf.mxu0
    %v482 = vadd.f32 0.0, %v481
    %v483 = vpop.f32.mrf.mxu0
    %v484 = vadd.f32 0.0, %v483
    %485 = vmatmul.bf16.gmra.mxu0 %v290
    %v486 = vpop.f32.mrf.mxu0
    %v487 = vadd.f32 0.0, %v486
    %v488 = vpop.f32.mrf.mxu0
    %v489 = vadd.f32 0.0, %v488
    %490 = vmatmul.bf16.gmra.mxu0 %v292
    %v491 = vpop.f32.mrf.mxu0
    %v492 = vadd.f32 0.0, %v491
    %v493 = vpop.f32.mrf.mxu0
    %v494 = vadd.f32 0.0, %v493
    %495 = vmatmul.bf16.gmra.mxu0 %v294
    %v496 = vpop.f32.mrf.mxu0
    %v497 = vadd.f32 0.0, %v496
    %v498 = vpop.f32.mrf.mxu0
    %v499 = vadd.f32 0.0, %v498
    %500 = vmatmul.bf16.gmra.mxu0 %v296
    %v501 = vpop.f32.mrf.mxu0
    %v502 = vadd.f32 0.0, %v501
    %v503 = vpop.f32.mrf.mxu0
    %v504 = vadd.f32 0.0, %v503
    %505 = vmatmul.bf16.gmra.mxu0 %v298
    %v506 = vpop.f32.mrf.mxu0
    %v507 = vadd.f32 0.0, %v506
    %v508 = vpop.f32.mrf.mxu0
    %v509 = vadd.f32 0.0, %v508
    %510 = vmatmul.bf16.gmra.mxu0 %v300
    %v511 = vpop.f32.mrf.mxu0
    %v512 = vadd.f32 0.0, %v511
    %v513 = vpop.f32.mrf.mxu0
    %v514 = vadd.f32 0.0, %v513
    %515 = vmatmul.bf16.gmra.mxu0 %v302
    %v516 = vpop.f32.mrf.mxu0
    %v517 = vadd.f32 0.0, %v516
    %v518 = vpop.f32.mrf.mxu0
    %v519 = vadd.f32 0.0, %v518
    %520 = vdwg.mxu0
    %521 = vmatpush.bf16.msra.mxu0 %v415
    %522 = vmatpush.bf16.msra.mxu0 %v414
    %523 = vmatpush.bf16.msra.mxu0 %v413
    %524 = vmatpush.bf16.msra.mxu0 %v412
    %525 = vmatpush.bf16.msra.mxu0 %v411
    %526 = vmatpush.bf16.msra.mxu0 %v410
    %527 = vmatpush.bf16.msra.mxu0 %v409
    %528 = vmatpush.bf16.msra.mxu0 %v408
    %529 = vmatmul.bf16.gmra.mxu0 %v273
    %v530 = vpop.f32.mrf.mxu0
    %v531 = vadd.f32 %v442, %v530
    %v532 = vpop.f32.mrf.mxu0
    %v533 = vadd.f32 %v444, %v532
    %534 = vmatmul.bf16.gmra.mxu0 %v275
    %v535 = vpop.f32.mrf.mxu0
    %v536 = vadd.f32 %v447, %v535
    %v537 = vpop.f32.mrf.mxu0
    %v538 = vadd.f32 %v449, %v537
    %539 = vmatmul.bf16.gmra.mxu0 %v277
    %v540 = vpop.f32.mrf.mxu0
    %v541 = vadd.f32 %v452, %v540
    %v542 = vpop.f32.mrf.mxu0
    %v543 = vadd.f32 %v454, %v542
    %544 = vmatmul.bf16.gmra.mxu0 %v279
    %v545 = vpop.f32.mrf.mxu0
    %v546 = vadd.f32 %v457, %v545
    %v547 = vpop.f32.mrf.mxu0
    %v548 = vadd.f32 %v459, %v547
    %549 = vmatmul.bf16.gmra.mxu0 %v281
    %v550 = vpop.f32.mrf.mxu0
    %v551 = vadd.f32 %v462, %v550
    %v552 = vpop.f32.mrf.mxu0
    %v553 = vadd.f32 %v464, %v552
    %554 = vmatmul.bf16.gmra.mxu0 %v283
    %v555 = vpop.f32.mrf.mxu0
    %v556 = vadd.f32 %v467, %v555
    %v557 = vpop.f32.mrf.mxu0
    %v558 = vadd.f32 %v469, %v557
    %559 = vmatmul.bf16.gmra.mxu0 %v285
    %v560 = vpop.f32.mrf.mxu0
    %v561 = vadd.f32 %v472, %v560
    %v562 = vpop.f32.mrf.mxu0
    %v563 = vadd.f32 %v474, %v562
    %564 = vmatmul.bf16.gmra.mxu0 %v287
    %v565 = vpop.f32.mrf.mxu0
    %v566 = vadd.f32 %v477, %v565
    %v567 = vpop.f32.mrf.mxu0
    %v568 = vadd.f32 %v479, %v567
    %569 = vmatmul.bf16.gmra.mxu0 %v289
    %v570 = vpop.f32.mrf.mxu0
    %v571 = vadd.f32 %v482, %v570
    %v572 = vpop.f32.mrf.mxu0
    %v573 = vadd.f32 %v484, %v572
    %574 = vmatmul.bf16.gmra.mxu0 %v291
    %v575 = vpop.f32.mrf.mxu0
    %v576 = vadd.f32 %v487, %v575
    %v577 = vpop.f32.mrf.mxu0
    %v578 = vadd.f32 %v489, %v577
    %579 = vmatmul.bf16.gmra.mxu0 %v293
    %v580 = vpop.f32.mrf.mxu0
    %v581 = vadd.f32 %v492, %v580
    %v582 = vpop.f32.mrf.mxu0
    %v583 = vadd.f32 %v494, %v582
    %584 = vmatmul.bf16.gmra.mxu0 %v295
    %v585 = vpop.f32.mrf.mxu0
    %v586 = vadd.f32 %v497, %v585
    %v587 = vpop.f32.mrf.mxu0
    %v588 = vadd.f32 %v499, %v587
    %589 = vmatmul.bf16.gmra.mxu0 %v297
    %v590 = vpop.f32.mrf.mxu0
    %v591 = vadd.f32 %v502, %v590
    %v592 = vpop.f32.mrf.mxu0
    %v593 = vadd.f32 %v504, %v592
    %594 = vmatmul.bf16.gmra.mxu0 %v299
    %v595 = vpop.f32.mrf.mxu0
    %v596 = vadd.f32 %v507, %v595
    %v597 = vpop.f32.mrf.mxu0
    %v598 = vadd.f32 %v509, %v597
    %599 = vmatmul.bf16.gmra.mxu0 %v301
    %v600 = vpop.f32.mrf.mxu0
    %v601 = vadd.f32 %v512, %v600
    %v602 = vpop.f32.mrf.mxu0
    %v603 = vadd.f32 %v514, %v602
    %604 = vmatmul.bf16.gmra.mxu0 %v303
    %v605 = vpop.f32.mrf.mxu0
    %v606 = vadd.f32 %v517, %v605
    %v607 = vpop.f32.mrf.mxu0
    %v608 = vadd.f32 %v519, %v607
    %609 = vdwg.mxu0
    %v610 = vadd.f32 %v80, %v531
    %v611 = vadd.f32 %v81, %v533
    %v612 = vadd.f32 %v82, %v536
    %v613 = vadd.f32 %v83, %v538
    %v614 = vadd.f32 %v84, %v541
    %v615 = vadd.f32 %v85, %v543
    %v616 = vadd.f32 %v86, %v546
    %v617 = vadd.f32 %v87, %v548
    %v618 = vadd.f32 %v88, %v551
    %v619 = vadd.f32 %v89, %v553
    %v620 = vadd.f32 %v90, %v556
    %v621 = vadd.f32 %v91, %v558
    %v622 = vadd.f32 %v92, %v561
    %v623 = vadd.f32 %v93, %v563
    %v624 = vadd.f32 %v94, %v566
    %v625 = vadd.f32 %v95, %v568
    %v626 = vadd.f32 %v96, %v571
    %v627 = vadd.f32 %v97, %v573
    %v628 = vadd.f32 %v98, %v576
    %v629 = vadd.f32 %v99, %v578
    %v630 = vadd.f32 %v100, %v581
    %v631 = vadd.f32 %v101, %v583
    %v632 = vadd.f32 %v102, %v586
    %v633 = vadd.f32 %v103, %v588
    %v634 = vadd.f32 %v104, %v591
    %v635 = vadd.f32 %v105, %v593
    %v636 = vadd.f32 %v106, %v596
    %v637 = vadd.f32 %v107, %v598
    %v638 = vadd.f32 %v108, %v601
    %v639 = vadd.f32 %v109, %v603
    %v640 = vadd.f32 %v110, %v606
    %v641 = vadd.f32 %v111, %v608
    %642 = vst [vmem:[#allocation2] sm:$0xff] %v610
    %643 = vst [vmem:[#allocation2 + $0x8] sm:$0xff] %v611
    %644 = vst [vmem:[#allocation2 + $0x10] sm:$0xff] %v612
    %645 = vst [vmem:[#allocation2 + $0x18] sm:$0xff] %v613
    %646 = vst [vmem:[#allocation2 + $0x20] sm:$0xff] %v614
    %647 = vst [vmem:[#allocation2 + $0x28] sm:$0xff] %v615
    %648 = vst [vmem:[#allocation2 + $0x30] sm:$0xff] %v616
    %649 = vst [vmem:[#allocation2 + $0x38] sm:$0xff] %v617
    %650 = vst [vmem:[#allocation2 + $0x40] sm:$0xff] %v618
    %651 = vst [vmem:[#allocation2 + $0x48] sm:$0xff] %v619
    %652 = vst [vmem:[#allocation2 + $0x50] sm:$0xff] %v620
    %653 = vst [vmem:[#allocation2 + $0x58] sm:$0xff] %v621
    %654 = vst [vmem:[#allocation2 + $0x60] sm:$0xff] %v622
    %655 = vst [vmem:[#allocation2 + $0x68] sm:$0xff] %v623
    %656 = vst [vmem:[#allocation2 + $0x70] sm:$0xff] %v624
    %657 = vst [vmem:[#allocation2 + $0x78] sm:$0xff] %v625
    %658 = vst [vmem:[#allocation2 + $0x80] sm:$0xff] %v626
    %659 = vst [vmem:[#allocation2 + $0x88] sm:$0xff] %v627
    %660 = vst [vmem:[#allocation2 + $0x90] sm:$0xff] %v628
    %661 = vst [vmem:[#allocation2 + $0x98] sm:$0xff] %v629
    %662 = vst [vmem:[#allocation2 + $0xa0] sm:$0xff] %v630
    %663 = vst [vmem:[#allocation2 + $0xa8] sm:$0xff] %v631
    %664 = vst [vmem:[#allocation2 + $0xb0] sm:$0xff] %v632
    %665 = vst [vmem:[#allocation2 + $0xb8] sm:$0xff] %v633
    %666 = vst [vmem:[#allocation2 + $0xc0] sm:$0xff] %v634
    %667 = vst [vmem:[#allocation2 + $0xc8] sm:$0xff] %v635
    %668 = vst [vmem:[#allocation2 + $0xd0] sm:$0xff] %v636
    %669 = vst [vmem:[#allocation2 + $0xd8] sm:$0xff] %v637
    %670 = vst [vmem:[#allocation2 + $0xe0] sm:$0xff] %v638
    %671 = vst [vmem:[#allocation2 + $0xe8] sm:$0xff] %v639
    %672 = vst [vmem:[#allocation2 + $0xf0] sm:$0xff] %v640
    %673 = vst [vmem:[#allocation2 + $0xf8] sm:$0xff] %v641
    // Predicated region
    $region22: #{tpu_custom_call.1} parent=1 // pred_check
      %p674 = pneg %p44
    $region23: #{tpu_custom_call.1} parent=1 // pred_check_branch
      %676 = sbr.rel (%p674) target = $region25
    $region24: #{tpu_custom_call.1} parent=1 // pred_region
      %v677 = vld [vmem:[#allocation2] sm:$0xff]
      %v678 = vld [vmem:[#allocation2 + $0x8] sm:$0xff]
      %v679 = vld [vmem:[#allocation2 + $0x10] sm:$0xff]
      %v680 = vld [vmem:[#allocation2 + $0x18] sm:$0xff]
      %v681 = vld [vmem:[#allocation2 + $0x20] sm:$0xff]
      %v682 = vld [vmem:[#allocation2 + $0x28] sm:$0xff]
      %v683 = vld [vmem:[#allocation2 + $0x30] sm:$0xff]
      %v684 = vld [vmem:[#allocation2 + $0x38] sm:$0xff]
      %v685 = vld [vmem:[#allocation2 + $0x40] sm:$0xff]
      %v686 = vld [vmem:[#allocation2 + $0x48] sm:$0xff]
      %v687 = vld [vmem:[#allocation2 + $0x50] sm:$0xff]
      %v688 = vld [vmem:[#allocation2 + $0x58] sm:$0xff]
      %v689 = vld [vmem:[#allocation2 + $0x60] sm:$0xff]
      %v690 = vld [vmem:[#allocation2 + $0x68] sm:$0xff]
      %v691 = vld [vmem:[#allocation2 + $0x70] sm:$0xff]
      %v692 = vld [vmem:[#allocation2 + $0x78] sm:$0xff]
      %v693 = vld [vmem:[#allocation2 + $0x80] sm:$0xff]
      %v694 = vld [vmem:[#allocation2 + $0x88] sm:$0xff]
      %v695 = vld [vmem:[#allocation2 + $0x90] sm:$0xff]
      %v696 = vld [vmem:[#allocation2 + $0x98] sm:$0xff]
      %v697 = vld [vmem:[#allocation2 + $0xa0] sm:$0xff]
      %v698 = vld [vmem:[#allocation2 + $0xa8] sm:$0xff]
      %v699 = vld [vmem:[#allocation2 + $0xb0] sm:$0xff]
      %v700 = vld [vmem:[#allocation2 + $0xb8] sm:$0xff]
      %v701 = vld [vmem:[#allocation2 + $0xc0] sm:$0xff]
      %v702 = vld [vmem:[#allocation2 + $0xc8] sm:$0xff]
      %v703 = vld [vmem:[#allocation2 + $0xd0] sm:$0xff]
      %v704 = vld [vmem:[#allocation2 + $0xd8] sm:$0xff]
      %v705 = vld [vmem:[#allocation2 + $0xe0] sm:$0xff]
      %v706 = vld [vmem:[#allocation2 + $0xe8] sm:$0xff]
      %v707 = vld [vmem:[#allocation2 + $0xf0] sm:$0xff]
      %v708 = vld [vmem:[#allocation2 + $0xf8] sm:$0xff]
      %v709 = vpack.c.bf16 %v677, %v677
      %v710 = vpack.c.bf16 %v678, %v678
      %v711 = vpack.c.bf16 %v679, %v679
      %v712 = vpack.c.bf16 %v680, %v680
      %v713 = vpack.c.bf16 %v681, %v681
      %v714 = vpack.c.bf16 %v682, %v682
      %v715 = vpack.c.bf16 %v683, %v683
      %v716 = vpack.c.bf16 %v684, %v684
      %v717 = vpack.c.bf16 %v685, %v685
      %v718 = vpack.c.bf16 %v686, %v686
      %v719 = vpack.c.bf16 %v687, %v687
      %v720 = vpack.c.bf16 %v688, %v688
      %v721 = vpack.c.bf16 %v689, %v689
      %v722 = vpack.c.bf16 %v690, %v690
      %v723 = vpack.c.bf16 %v691, %v691
      %v724 = vpack.c.bf16 %v692, %v692
      %v725 = vpack.c.bf16 %v693, %v693
      %v726 = vpack.c.bf16 %v694, %v694
      %v727 = vpack.c.bf16 %v695, %v695
      %v728 = vpack.c.bf16 %v696, %v696
      %v729 = vpack.c.bf16 %v697, %v697
      %v730 = vpack.c.bf16 %v698, %v698
      %v731 = vpack.c.bf16 %v699, %v699
      %v732 = vpack.c.bf16 %v700, %v700
      %v733 = vpack.c.bf16 %v701, %v701
      %v734 = vpack.c.bf16 %v702, %v702
      %v735 = vpack.c.bf16 %v703, %v703
      %v736 = vpack.c.bf16 %v704, %v704
      %v737 = vpack.c.bf16 %v705, %v705
      %v738 = vpack.c.bf16 %v706, %v706
      %v739 = vpack.c.bf16 %v707, %v707
      %v740 = vpack.c.bf16 %v708, %v708
      %741 = vst [vmem:[#allocation8] sm:$0xf] %v709
      %742 = vst [vmem:[#allocation8 + $0x4] sm:$0xf] %v710
      %743 = vst [vmem:[#allocation8 + $0x8] sm:$0xf] %v711
      %744 = vst [vmem:[#allocation8 + $0xc] sm:$0xf] %v712
      %745 = vst [vmem:[#allocation8 + $0x10] sm:$0xf] %v713
      %746 = vst [vmem:[#allocation8 + $0x14] sm:$0xf] %v714
      %747 = vst [vmem:[#allocation8 + $0x18] sm:$0xf] %v715
      %748 = vst [vmem:[#allocation8 + $0x1c] sm:$0xf] %v716
      %749 = vst [vmem:[#allocation8 + $0x20] sm:$0xf] %v717
      %750 = vst [vmem:[#allocation8 + $0x24] sm:$0xf] %v718
      %751 = vst [vmem:[#allocation8 + $0x28] sm:$0xf] %v719
      %752 = vst [vmem:[#allocation8 + $0x2c] sm:$0xf] %v720
      %753 = vst [vmem:[#allocation8 + $0x30] sm:$0xf] %v721
      %754 = vst [vmem:[#allocation8 + $0x34] sm:$0xf] %v722
      %755 = vst [vmem:[#allocation8 + $0x38] sm:$0xf] %v723
      %756 = vst [vmem:[#allocation8 + $0x3c] sm:$0xf] %v724
      %757 = vst [vmem:[#allocation8 + $0x40] sm:$0xf] %v725
      %758 = vst [vmem:[#allocation8 + $0x44] sm:$0xf] %v726
      %759 = vst [vmem:[#allocation8 + $0x48] sm:$0xf] %v727
      %760 = vst [vmem:[#allocation8 + $0x4c] sm:$0xf] %v728
      %761 = vst [vmem:[#allocation8 + $0x50] sm:$0xf] %v729
      %762 = vst [vmem:[#allocation8 + $0x54] sm:$0xf] %v730
      %763 = vst [vmem:[#allocation8 + $0x58] sm:$0xf] %v731
      %764 = vst [vmem:[#allocation8 + $0x5c] sm:$0xf] %v732
      %765 = vst [vmem:[#allocation8 + $0x60] sm:$0xf] %v733
      %766 = vst [vmem:[#allocation8 + $0x64] sm:$0xf] %v734
      %767 = vst [vmem:[#allocation8 + $0x68] sm:$0xf] %v735
      %768 = vst [vmem:[#allocation8 + $0x6c] sm:$0xf] %v736
      %769 = vst [vmem:[#allocation8 + $0x70] sm:$0xf] %v737
      %770 = vst [vmem:[#allocation8 + $0x74] sm:$0xf] %v738
      %771 = vst [vmem:[#allocation8 + $0x78] sm:$0xf] %v739
      %772 = vst [vmem:[#allocation8 + $0x7c] sm:$0xf] %v740
    $region25: #{tpu_custom_call.1} parent=1 // pred_fallthru
      _
    // Predicated region
    $region26: #{tpu_custom_call.1} parent=1 // pred_check
      _
    $region27: #{tpu_custom_call.1} parent=1 // pred_check_branch
      %774 = sbr.rel (0) target = $region29
    $region28: #{tpu_custom_call.1} parent=1 // pred_region
      %776 = vsyncadd [#allocation5], 0
      %s777 = sshll.u32 [#allocation8], 4
      %s778 = int_to_ptr.vmem [resolvable:$true] %s777
      %s779 = sshll.u32 %s2, 4
      %s780 = int_to_ptr.hbm [resolvable:$true] %s779
      %785 = dma.vmem_to_hbm [thread:$0]  %s778, 2048, %s780, [#allocation5], 64, 64, 4
    $region29: #{tpu_custom_call.1} parent=1 // pred_fallthru
      _
    // Predicated region
    $region30: #{tpu_custom_call.1} parent=1 // pred_check
      _
    $region31: #{tpu_custom_call.1} parent=1 // pred_check_branch
      %787 = sbr.rel (0) target = $region33
    $region32: #{tpu_custom_call.1} parent=1 // pred_region
      %789 = dma.done [#allocation5], 2048
    $region33: #{tpu_custom_call.1} parent=1 // pred_fallthru
      _
    %790 = vsyncpa [#allocation4], 1
    %791 = vsyncpa [#allocation7], 1
    %792 = vsyncpa [#allocation5], 1

</llo_original>
